<compile_context>
chip_gen: v7x
topology: tpu7x:2x2x1
jax: 0.10.0
libtpu: 0.0.40
codegen_flags: <defaults>
</compile_context>

<pallas_src>
import math

import jax
import jax.numpy as jnp
from jax import lax
from jax.experimental import pallas as pl
from jax.experimental.pallas import tpu as pltpu


def _leaky_relu(x, negative_slope=0.01):
    # matches torch.nn.LeakyReLU default negative_slope=0.01
    return jnp.where(x > 0, x, negative_slope * x)


def critic_kernel(enc_ref, act_ref, w1e_ref, w1a_ref, b1_ref,
                  w2_ref, b2_ref, w3_ref, b3_ref, o_ref):
    cdt = w1e_ref.dtype                       # MXU compute dtype (bf16)
    dn = (((1,), (1,)), ((), ()))             # contract last dims: A @ B.T

    enc = enc_ref[...]                        # [TB, E] f32
    act = act_ref[...]                        # [TB, A] f32

    # layer 1 (concat fused, transposed): h1_T = W1e @ enc.T + W1a @ act.T + b1
    h = lax.dot_general(w1e_ref[...], enc.astype(cdt), dn,
                        preferred_element_type=jnp.float32)       # [H, TB]
    h = h + lax.dot_general(w1a_ref[...], act.astype(cdt), dn,
                            preferred_element_type=jnp.float32)
    h = _leaky_relu(h + b1_ref[...])          # f32 VPU, [H,1] bias bcast over lanes

    # layer 2: h2_T = W2 @ h1_T + b2                               [H, TB]
    h = jnp.dot(w2_ref[...], h.astype(cdt),
                preferred_element_type=jnp.float32)
    h = _leaky_relu(h + b2_ref[...])

    # layer 3 (single output unit): VPU multiply + sublane reduce instead of a
    # degenerate [H,1] MXU matmul; scalar bias comes from SMEM.
    o = jnp.sum(h * w3_ref[...], axis=0, keepdims=True) + b3_ref[0, 0]  # [1, TB]
    o_ref[...] = o.astype(o_ref.dtype)


def critic_forward(encode, action, params, *, compute_dtype=jnp.bfloat16):
    """encode: [B, E], action: [B, A]  ->  [B, 1] (float32)."""
    B, E = encode.shape
    Ba, A = action.shape
    assert Ba == B
    w1, b1, w2, b2, w3, b3 = params           # PyTorch layout: W [out, in], b [out]
    H = w1.shape[0]
    assert w1.shape == (H, E + A)

    # Split W1 so the concat happens inside the kernel; cast MXU operands to bf16.
    w1e = w1[:, :E].astype(compute_dtype)             # [H, E]
    w1a = w1[:, E:].astype(compute_dtype)             # [H, A]
    w2c = w2.astype(compute_dtype)                    # [H, H]
    b1c = b1.reshape(H, 1).astype(jnp.float32)        # [H, 1] (lane-broadcast)
    b2c = b2.reshape(H, 1).astype(jnp.float32)
    w3c = w3.reshape(H, 1).astype(jnp.float32)        # used on the VPU -> keep f32
    b3c = b3.reshape(1, 1).astype(jnp.float32)        # SMEM scalar

    # Batch tiling: single full block for small B, lane-dense 512-row tiles
    # (multiple of 128) once B is large.  Partial edge tiles are masked by Pallas.
    TB = B if B <= 512 else 512
    grid = (pl.cdiv(B, TB),)

    out = pl.pallas_call(
        critic_kernel,
        out_shape=jax.ShapeDtypeStruct((1, B), jnp.float32),
        grid=grid,
        in_specs=[
            pl.BlockSpec((TB, E), lambda i: (i, 0)),      # encode tile
            pl.BlockSpec((TB, A), lambda i: (i, 0)),      # action tile
            pl.BlockSpec((H, E), lambda i: (0, 0)),       # W1_enc (VMEM-resident)
            pl.BlockSpec((H, A), lambda i: (0, 0)),       # W1_act
            pl.BlockSpec((H, 1), lambda i: (0, 0)),       # b1
            pl.BlockSpec((H, H), lambda i: (0, 0)),       # W2
            pl.BlockSpec((H, 1), lambda i: (0, 0)),       # b2
            pl.BlockSpec((H, 1), lambda i: (0, 0)),       # w3 (column)
            pl.BlockSpec(memory_space=pltpu.MemorySpace.SMEM),  # b3 scalar
        ],
        out_specs=pl.BlockSpec((1, TB), lambda i: (0, i)),      # lane-dense row
        compiler_params=pltpu.CompilerParams(
            dimension_semantics=("parallel",)),
    )(encode, action, w1e, w1a, b1c, w2c, b2c, w3c, b3c)

    return out.reshape(B, 1)


def init_critic_params(key, encode_size, action_size, hidden_size=32):
    """PyTorch-style init; weights in PyTorch layout W[out, in], bias [out]."""
    dims = [(hidden_size, encode_size + action_size),
            (hidden_size, hidden_size),
            (1, hidden_size)]
    params = []
    for (fan_out, fan_in) in dims:
        key, kw, kb = jax.random.split(key, 3)
        bound = 1.0 / math.sqrt(fan_in)
        w = jax.random.uniform(kw, (fan_out, fan_in), jnp.float32, -bound, bound)
        b = jax.random.uniform(kb, (fan_out,), jnp.float32, -bound, bound)
        params.extend([w, b])
    return tuple(params)


if __name__ == "__main__":
    key = jax.random.PRNGKey(0)
    batch, encode_size, action_size, hidden_size = 8, 16, 4, 32

    k_enc, k_act, k_par = jax.random.split(key, 3)
    encode = jax.random.normal(k_enc, (batch, encode_size), jnp.float32)
    action = jax.random.normal(k_act, (batch, action_size), jnp.float32)
    params = init_critic_params(k_par, encode_size, action_size, hidden_size)

    out = critic_forward(encode, action, params)
    out = jax.block_until_ready(out)

    # pure-JAX f32 reference (PyTorch semantics: y = x @ W.T + b)
    w1, b1, w2, b2, w3, b3 = params
    x = jnp.concatenate([encode, action], axis=-1)
    h = x @ w1.T + b1
    h = jnp.where(h > 0, h, 0.01 * h)
    h = h @ w2.T + b2
    h = jnp.where(h > 0, h, 0.01 * h)
    ref = h @ w3.T + b3                                  # [B, 1]

    assert out.shape == (batch, 1), out.shape
    # bf16 MXU operands with f32 accumulation -> loosened tolerance vs f32 ref
    assert jnp.allclose(out, ref, atol=2e-2, rtol=2e-2), float(jnp.max(jnp.abs(out - ref)))
    print("KERNEL_OK")
</pallas_src>

<mosaic_0001>
module attributes {stable_mosaic.version = 11 : i64} {
  func.func @critic_kernel(%arg0: i32, %arg1: memref<8x16xf32, #tpu.memory_space<vmem>>, %arg2: memref<8x4xf32, #tpu.memory_space<vmem>>, %arg3: memref<32x16xbf16, #tpu.memory_space<vmem>>, %arg4: memref<32x4xbf16, #tpu.memory_space<vmem>>, %arg5: memref<32x1xf32, #tpu.memory_space<vmem>>, %arg6: memref<32x32xbf16, #tpu.memory_space<vmem>>, %arg7: memref<32x1xf32, #tpu.memory_space<vmem>>, %arg8: memref<32x1xf32, #tpu.memory_space<vmem>>, %arg9: memref<1x1xf32, #tpu.memory_space<smem>>, %arg10: memref<1x8xf32, #tpu.memory_space<vmem>>) attributes {dimension_semantics = [#tpu.dimension_semantics<parallel>], iteration_bounds = array<i64: 1>, scalar_prefetch = 0 : i64, scratch_operands = 0 : i64, tpu.core_type = #tpu.core_type<tc>, window_params = [{transform_indices = @transform_0, window_bounds = array<i64: 8, 16>}, {transform_indices = @transform_1, window_bounds = array<i64: 8, 4>}, {pipeline_mode = #tpu.pipeline_mode<synchronous>, transform_indices = @transform_2, window_bounds = array<i64: 32, 16>}, {pipeline_mode = #tpu.pipeline_mode<synchronous>, transform_indices = @transform_3, window_bounds = array<i64: 32, 4>}, {pipeline_mode = #tpu.pipeline_mode<synchronous>, transform_indices = @transform_4, window_bounds = array<i64: 32, 1>}, {pipeline_mode = #tpu.pipeline_mode<synchronous>, transform_indices = @transform_5, window_bounds = array<i64: 32, 32>}, {pipeline_mode = #tpu.pipeline_mode<synchronous>, transform_indices = @transform_6, window_bounds = array<i64: 32, 1>}, {pipeline_mode = #tpu.pipeline_mode<synchronous>, transform_indices = @transform_7, window_bounds = array<i64: 32, 1>}, {transform_indices = @transform_8, window_bounds = array<i64: 1, 1>}, {transform_indices = @transform_9, window_bounds = array<i64: 1, 8>}]} {
    %c0 = arith.constant 0 : index
    %c0_0 = arith.constant 0 : index
    %0 = vector.load %arg1[%c0, %c0_0] : memref<8x16xf32, #tpu.memory_space<vmem>>, vector<8x16xf32>
    %c0_1 = arith.constant 0 : index
    %c0_2 = arith.constant 0 : index
    %1 = vector.load %arg2[%c0_1, %c0_2] : memref<8x4xf32, #tpu.memory_space<vmem>>, vector<8x4xf32>
    %c0_3 = arith.constant 0 : index
    %c0_4 = arith.constant 0 : index
    %2 = vector.load %arg3[%c0_3, %c0_4] : memref<32x16xbf16, #tpu.memory_space<vmem>>, vector<32x16xbf16>
    %3 = arith.truncf %0 : vector<8x16xf32> to vector<8x16xbf16>
    %cst = arith.constant dense<0.000000e+00> : vector<32x8xf32>
    %4 = tpu.matmul %2, %3, %cst {dimension_numbers = #tpu.dot_dimension_numbers<[1], [1], [0], [0], [0, 0, 1, 0], [], []>} : vector<32x16xbf16>, vector<8x16xbf16>, vector<32x8xf32> -> vector<32x8xf32>
    %c0_5 = arith.constant 0 : index
    %c0_6 = arith.constant 0 : index
    %5 = vector.load %arg4[%c0_5, %c0_6] : memref<32x4xbf16, #tpu.memory_space<vmem>>, vector<32x4xbf16>
    %6 = arith.truncf %1 : vector<8x4xf32> to vector<8x4xbf16>
    %cst_7 = arith.constant dense<0.000000e+00> : vector<32x8xf32>
    %7 = tpu.matmul %5, %6, %cst_7 {dimension_numbers = #tpu.dot_dimension_numbers<[1], [1], [0], [0], [0, 0, 1, 0], [], []>} : vector<32x4xbf16>, vector<8x4xbf16>, vector<32x8xf32> -> vector<32x8xf32>
    %8 = arith.addf %4, %7 : vector<32x8xf32>
    %c0_8 = arith.constant 0 : index
    %c0_9 = arith.constant 0 : index
    %9 = vector.load %arg5[%c0_8, %c0_9] : memref<32x1xf32, #tpu.memory_space<vmem>>, vector<32x1xf32>
    %10 = vector.broadcast %9 : vector<32x1xf32> to vector<32x8xf32>
    %11 = arith.addf %8, %10 : vector<32x8xf32>
    %cst_10 = arith.constant 0.000000e+00 : f32
    %12 = vector.broadcast %cst_10 : f32 to vector<32x8xf32>
    %13 = arith.cmpf ogt, %11, %12 : vector<32x8xf32>
    %cst_11 = arith.constant 0.00999999977 : f32
    %14 = vector.broadcast %cst_11 : f32 to vector<32x8xf32>
    %15 = arith.mulf %14, %11 : vector<32x8xf32>
    %16 = arith.select %13, %11, %15 : vector<32x8xi1>, vector<32x8xf32>
    %c0_12 = arith.constant 0 : index
    %c0_13 = arith.constant 0 : index
    %17 = vector.load %arg6[%c0_12, %c0_13] : memref<32x32xbf16, #tpu.memory_space<vmem>>, vector<32x32xbf16>
    %18 = arith.truncf %16 : vector<32x8xf32> to vector<32x8xbf16>
    %cst_14 = arith.constant dense<0.000000e+00> : vector<32x8xf32>
    %19 = tpu.matmul %17, %18, %cst_14 {dimension_numbers = #tpu.dot_dimension_numbers<[1], [0], [0], [1], [0, 0, 1, 1], [], []>} : vector<32x32xbf16>, vector<32x8xbf16>, vector<32x8xf32> -> vector<32x8xf32>
    %c0_15 = arith.constant 0 : index
    %c0_16 = arith.constant 0 : index
    %20 = vector.load %arg7[%c0_15, %c0_16] : memref<32x1xf32, #tpu.memory_space<vmem>>, vector<32x1xf32>
    %21 = vector.broadcast %20 : vector<32x1xf32> to vector<32x8xf32>
    %22 = arith.addf %19, %21 : vector<32x8xf32>
    %cst_17 = arith.constant 0.000000e+00 : f32
    %23 = vector.broadcast %cst_17 : f32 to vector<32x8xf32>
    %24 = arith.cmpf ogt, %22, %23 : vector<32x8xf32>
    %cst_18 = arith.constant 0.00999999977 : f32
    %25 = vector.broadcast %cst_18 : f32 to vector<32x8xf32>
    %26 = arith.mulf %25, %22 : vector<32x8xf32>
    %27 = arith.select %24, %22, %26 : vector<32x8xi1>, vector<32x8xf32>
    %c0_19 = arith.constant 0 : index
    %c0_20 = arith.constant 0 : index
    %28 = vector.load %arg8[%c0_19, %c0_20] : memref<32x1xf32, #tpu.memory_space<vmem>>, vector<32x1xf32>
    %29 = vector.broadcast %28 : vector<32x1xf32> to vector<32x8xf32>
    %30 = arith.mulf %27, %29 : vector<32x8xf32>
    %cst_21 = arith.constant dense<0.000000e+00> : vector<8xf32>
    %31 = vector.multi_reduction <add>, %30, %cst_21 [0] : vector<32x8xf32> to vector<8xf32>
    %32 = vector.shape_cast %31 : vector<8xf32> to vector<1x8xf32>
    %c0_22 = arith.constant 0 : index
    %c0_23 = arith.constant 0 : index
    %33 = memref.load %arg9[%c0_22, %c0_23] : memref<1x1xf32, #tpu.memory_space<smem>>
    %34 = vector.broadcast %33 : f32 to vector<1x8xf32>
    %35 = arith.addf %32, %34 : vector<1x8xf32>
    %c0_24 = arith.constant 0 : index
    %c0_25 = arith.constant 0 : index
    %36 = vector.load %arg10[%c0_24, %c0_25] : memref<1x8xf32, #tpu.memory_space<vmem>>, vector<1x8xf32>
    tpu.vector_store %arg10[%c0_24, %c0_25], %35 {strides = array<i32>} : memref<1x8xf32, #tpu.memory_space<vmem>>, vector<1x8xf32>,
    return
  }
  func.func @transform_0(%arg0: i32) -> (i32, i32) {
    %c0_i32 = arith.constant 0 : i32
    %c0_i32_0 = arith.constant 0 : i32
    return %arg0, %c0_i32 : i32, i32
  }
  func.func @transform_1(%arg0: i32) -> (i32, i32) {
    %c0_i32 = arith.constant 0 : i32
    %c0_i32_0 = arith.constant 0 : i32
    return %arg0, %c0_i32 : i32, i32
  }
  func.func @transform_2(%arg0: i32) -> (i32, i32) {
    %c0_i32 = arith.constant 0 : i32
    %c0_i32_0 = arith.constant 0 : i32
    %c0_i32_1 = arith.constant 0 : i32
    return %c0_i32, %c0_i32_0 : i32, i32
  }
  func.func @transform_3(%arg0: i32) -> (i32, i32) {
    %c0_i32 = arith.constant 0 : i32
    %c0_i32_0 = arith.constant 0 : i32
    %c0_i32_1 = arith.constant 0 : i32
    return %c0_i32, %c0_i32_0 : i32, i32
  }
  func.func @transform_4(%arg0: i32) -> (i32, i32) {
    %c0_i32 = arith.constant 0 : i32
    %c0_i32_0 = arith.constant 0 : i32
    %c0_i32_1 = arith.constant 0 : i32
    return %c0_i32, %c0_i32_0 : i32, i32
  }
  func.func @transform_5(%arg0: i32) -> (i32, i32) {
    %c0_i32 = arith.constant 0 : i32
    %c0_i32_0 = arith.constant 0 : i32
    %c0_i32_1 = arith.constant 0 : i32
    return %c0_i32, %c0_i32_0 : i32, i32
  }
  func.func @transform_6(%arg0: i32) -> (i32, i32) {
    %c0_i32 = arith.constant 0 : i32
    %c0_i32_0 = arith.constant 0 : i32
    %c0_i32_1 = arith.constant 0 : i32
    return %c0_i32, %c0_i32_0 : i32, i32
  }
  func.func @transform_7(%arg0: i32) -> (i32, i32) {
    %c0_i32 = arith.constant 0 : i32
    %c0_i32_0 = arith.constant 0 : i32
    %c0_i32_1 = arith.constant 0 : i32
    return %c0_i32, %c0_i32_0 : i32, i32
  }
  func.func @transform_8(%arg0: i32) -> (i32, i32) {
    %c0_i32 = arith.constant 0 : i32
    %c0_i32_0 = arith.constant 0 : i32
    %c0_i32_1 = arith.constant 0 : i32
    return %c0_i32, %c0_i32_0 : i32, i32
  }
  func.func @transform_9(%arg0: i32) -> (i32, i32) {
    %c0_i32 = arith.constant 0 : i32
    %c0_i32_0 = arith.constant 0 : i32
    return %c0_i32, %arg0 : i32, i32
  }
}

</mosaic_0001>

<llo_original>
// kernel: tpu_custom_call.1
$region0: #{tpu_custom_call.1}
  #allocation0 [shape = 'u32[]', space=smem, size = 0x4, offset = 0x4, fixed_abs, tag = 'smem constant byte address 0x4 - core index']
  #allocation1 [shape = 'u32[144,128]{1,0:T(1,128)}', space=vmem, size = 0x12000, scoped, tag = 'internal scratch']
  #allocation2 [shape = 'f32[1,1]{1,0:T(1,128)S(6)}', space=smem, size = 0x200, scoped, tag = 'scoped memory for tpu_custom_call.1']
  %s0 = inlined_call_operand.vmem [shape: f32[8,16], index: 0, kind: input, shape index: {}]
  %s1 = inlined_call_operand.vmem [shape: f32[8,4], index: 1, kind: input, shape index: {}]
  %s2 = inlined_call_operand.vmem [shape: bf16[32,16], index: 2, kind: input, shape index: {}]
  %s3 = inlined_call_operand.vmem [shape: bf16[32,4], index: 3, kind: input, shape index: {}]
  %s4 = inlined_call_operand.vmem [shape: f32[32,1], index: 4, kind: input, shape index: {}]
  %s5 = inlined_call_operand.vmem [shape: bf16[32,32], index: 5, kind: input, shape index: {}]
  %s6 = inlined_call_operand.vmem [shape: f32[32,1], index: 6, kind: input, shape index: {}]
  %s7 = inlined_call_operand.vmem [shape: f32[32,1], index: 7, kind: input, shape index: {}]
  %s8 = inlined_call_operand.<no memory space> [shape: f32[1,1], index: 8, kind: input, shape index: {}]
  %s9 = inlined_call_operand.hbm [shape: f32[1,8], index: 9, kind: output, shape index: {}]
  %s10 = sld [smem:[#allocation0]]
  $region46: #{tpu_custom_call.1} parent=0
    _
  %s12 = ssub.s32 1, %s10
  %s13 = scalar_select 0, %s12, %s10
  %14 = sst [smem:[#allocation2]] %s8
  $region1: #{tpu_custom_call.1} parent=0
    #allocation3 [shape = 'u8[512]{0}', space=vmem, size = 0x400, scoped, tag = 'output window, operand 0, single buffered']
    #allocation4 [shape = 's32[1]{0}', space=sflag, size = 0x4, scoped, tag = 'scoped memory for tpu_custom_call.1']
    %15 = vsyncpa [#allocation4], 0
    // Predicated region
    $region2: #{tpu_custom_call.1} parent=1 // pred_check
      _
    $region3: #{tpu_custom_call.1} parent=1 // pred_check_branch
      %17 = sbr.rel (0) target = $region5
    $region4: #{tpu_custom_call.1} parent=1 // pred_region
      _
    $region5: #{tpu_custom_call.1} parent=1 // pred_fallthru
      _
    // Predicated region
    $region6: #{tpu_custom_call.1} parent=1 // pred_check
      _
    $region7: #{tpu_custom_call.1} parent=1 // pred_check_branch
      %19 = sbr.rel (0) target = $region9
    $region8: #{tpu_custom_call.1} parent=1 // pred_region
      _
    $region9: #{tpu_custom_call.1} parent=1 // pred_fallthru
      _
    // Predicated region
    $region10: #{tpu_custom_call.1} parent=1 // pred_check
      _
    $region11: #{tpu_custom_call.1} parent=1 // pred_check_branch
      %21 = sbr.rel (0) target = $region13
    $region12: #{tpu_custom_call.1} parent=1 // pred_region
      _
    $region13: #{tpu_custom_call.1} parent=1 // pred_fallthru
      _
    // Predicated region
    $region14: #{tpu_custom_call.1} parent=1 // pred_check
      _
    $region15: #{tpu_custom_call.1} parent=1 // pred_check_branch
      %23 = sbr.rel (0) target = $region17
    $region16: #{tpu_custom_call.1} parent=1 // pred_region
      _
    $region17: #{tpu_custom_call.1} parent=1 // pred_fallthru
      _
    // Predicated region
    $region18: #{tpu_custom_call.1} parent=1 // pred_check
      _
    $region19: #{tpu_custom_call.1} parent=1 // pred_check_branch
      %25 = sbr.rel (0) target = $region21
    $region20: #{tpu_custom_call.1} parent=1 // pred_region
      _
    $region21: #{tpu_custom_call.1} parent=1 // pred_fallthru
      _
    // Predicated region
    $region22: #{tpu_custom_call.1} parent=1 // pred_check
      _
    $region23: #{tpu_custom_call.1} parent=1 // pred_check_branch
      %27 = sbr.rel (0) target = $region25
    $region24: #{tpu_custom_call.1} parent=1 // pred_region
      _
    $region25: #{tpu_custom_call.1} parent=1 // pred_fallthru
      _
    // Predicated region
    $region26: #{tpu_custom_call.1} parent=1 // pred_check
      _
    $region27: #{tpu_custom_call.1} parent=1 // pred_check_branch
      %29 = sbr.rel (0) target = $region29
    $region28: #{tpu_custom_call.1} parent=1 // pred_region
      _
    $region29: #{tpu_custom_call.1} parent=1 // pred_fallthru
      _
    // Predicated region
    $region30: #{tpu_custom_call.1} parent=1 // pred_check
      _
    $region31: #{tpu_custom_call.1} parent=1 // pred_check_branch
      %31 = sbr.rel (0) target = $region33
    $region32: #{tpu_custom_call.1} parent=1 // pred_region
      _
    $region33: #{tpu_custom_call.1} parent=1 // pred_fallthru
      _
    // Predicated region
    $region34: #{tpu_custom_call.1} parent=1 // pred_check
      _
    $region35: #{tpu_custom_call.1} parent=1 // pred_check_branch
      %33 = sbr.rel (0) target = $region37
    $region36: #{tpu_custom_call.1} parent=1 // pred_region
      _
    $region37: #{tpu_custom_call.1} parent=1 // pred_fallthru
      _
    %v35 = vld [vmem:[%s0] sm:$0xff]
    %v36 = vld [vmem:[%s1] sm:$0xff]
    %v37 = vld [vmem:[%s2] sm:$0xf]
    %v38 = vld [vmem:[%s2 + $0x4] sm:$0xf]
    %v39 = vld [vmem:[%s2 + $0x8] sm:$0xf]
    %v40 = vld [vmem:[%s2 + $0xc] sm:$0xf]
    %v41 = vpack.c.bf16 %v35, %v35
    %v42 = vld [vmem:[%s3] sm:$0xf]
    %v43 = vld [vmem:[%s3 + $0x4] sm:$0xf]
    %v44 = vld [vmem:[%s3 + $0x8] sm:$0xf]
    %v45 = vld [vmem:[%s3 + $0xc] sm:$0xf]
    %v46 = vpack.c.bf16 %v36, %v36
    %v51 = vunpack.c.l.b16 %v42
    %v52 = vunpack.c.l.b16 %v43
    %v53 = vunpack.c.l.b16 %v44
    %v54 = vunpack.c.l.b16 %v45
    %v55 = vpack.c.b16 %v52, %v51
    %v56 = vpack.c.b16 %v54, %v53
    %vm57 = vcmask 31744
    %v59 = vsel %vm57, %v55, 0
    %v62 = vsel %vm57, %v56, 0
    %v65 = vsel %vm57, %v46, 0
    %67 = vmatprep.subr.bf16.mxu0 0
    %68 = vmatpush1.bf16.xpose.msra.mxu0 %v65
    %69 = vmatprep.subr.bf16.mxu0 0
    %70 = vmatpush1.bf16.xpose.msra.mxu0 0
    %71 = vmatprep.subr.bf16.mxu0 0
    %72 = vmatpush1.bf16.xpose.msra.mxu0 0
    %73 = vmatprep.subr.bf16.mxu0 0
    %74 = vmatpush1.bf16.xpose.msra.mxu0 0
    %75 = vmatprep.subr.bf16.mxu0 0
    %76 = vmatpush1.bf16.xpose.msra.mxu0 0
    %77 = vmatprep.subr.bf16.mxu0 0
    %78 = vmatpush1.bf16.xpose.msra.mxu0 0
    %79 = vmatprep.subr.bf16.mxu0 0
    %80 = vmatpush1.bf16.xpose.msra.mxu0 0
    %81 = vmatprep.subr.bf16.mxu0 0
    %82 = vmatpush1.bf16.xpose.msra.mxu0 0
    %83 = vmatprep.subr.bf16.mxu0 0
    %84 = vmatpush1.bf16.xpose.msra.mxu0 0
    %85 = vmatprep.subr.bf16.mxu0 0
    %86 = vmatpush1.bf16.xpose.msra.mxu0 0
    %87 = vmatprep.subr.bf16.mxu0 0
    %88 = vmatpush1.bf16.xpose.msra.mxu0 0
    %89 = vmatprep.subr.bf16.mxu0 0
    %90 = vmatpush1.bf16.xpose.msra.mxu0 0
    %91 = vmatprep.subr.bf16.mxu0 0
    %92 = vmatpush1.bf16.xpose.msra.mxu0 0
    %93 = vmatprep.subr.bf16.mxu0 0
    %94 = vmatpush1.bf16.xpose.msra.mxu0 0
    %95 = vmatprep.subr.bf16.mxu0 0
    %96 = vmatpush1.bf16.xpose.msra.mxu0 0
    %97 = vmatprep.subr.bf16.mxu0 0
    %98 = vmatpush1.bf16.xpose.msra.mxu0 0
    %99 = vmatprep.mubr.bf16.mxu0 0
    %100 = vmatmul.mubr.bf16.gmra.mrb[0].mxu0 %v59
    %v101 = vpop.f32.mrb[0].mxu0
    %v102 = vadd.f32 0.0, %v101
    %v103 = vpop.f32.mrb[0].mxu0
    %v104 = vpop.f32.mrb[0].mxu0
    %v105 = vadd.f32 0.0, %v104
    %v106 = vpop.f32.mrb[0].mxu0
    %107 = vmatprep.mubr.bf16.mxu0 0
    %108 = vmatmul.mubr.bf16.gmra.mrb[0].mxu0 %v62
    %v109 = vpop.f32.mrb[0].mxu0
    %v110 = vadd.f32 0.0, %v109
    %v111 = vpop.f32.mrb[0].mxu0
    %v112 = vpop.f32.mrb[0].mxu0
    %v113 = vadd.f32 0.0, %v112
    %v114 = vpop.f32.mrb[0].mxu0
    %115 = vdwg.mxu0
    %v120 = vunpack.c.l.b16 %v37
    %v121 = vunpack.c.l.b16 %v38
    %v122 = vunpack.c.l.b16 %v39
    %v123 = vunpack.c.l.b16 %v40
    %v124 = vpack.c.b16 %v121, %v120
    %v125 = vpack.c.b16 %v123, %v122
    %vm126 = vcmask 130048
    %v128 = vsel %vm126, %v124, 0
    %v131 = vsel %vm126, %v125, 0
    %v134 = vsel %vm126, %v41, 0
    %136 = vmatprep.subr.bf16.mxu0 0
    %137 = vmatpush1.bf16.xpose.msra.mxu0 %v134
    %138 = vmatprep.subr.bf16.mxu0 0
    %139 = vmatpush1.bf16.xpose.msra.mxu0 0
    %140 = vmatprep.subr.bf16.mxu0 0
    %141 = vmatpush1.bf16.xpose.msra.mxu0 0
    %142 = vmatprep.subr.bf16.mxu0 0
    %143 = vmatpush1.bf16.xpose.msra.mxu0 0
    %144 = vmatprep.subr.bf16.mxu0 0
    %145 = vmatpush1.bf16.xpose.msra.mxu0 0
    %146 = vmatprep.subr.bf16.mxu0 0
    %147 = vmatpush1.bf16.xpose.msra.mxu0 0
    %148 = vmatprep.subr.bf16.mxu0 0
    %149 = vmatpush1.bf16.xpose.msra.mxu0 0
    %150 = vmatprep.subr.bf16.mxu0 0
    %151 = vmatpush1.bf16.xpose.msra.mxu0 0
    %152 = vmatprep.subr.bf16.mxu0 0
    %153 = vmatpush1.bf16.xpose.msra.mxu0 0
    %154 = vmatprep.subr.bf16.mxu0 0
    %155 = vmatpush1.bf16.xpose.msra.mxu0 0
    %156 = vmatprep.subr.bf16.mxu0 0
    %157 = vmatpush1.bf16.xpose.msra.mxu0 0
    %158 = vmatprep.subr.bf16.mxu0 0
    %159 = vmatpush1.bf16.xpose.msra.mxu0 0
    %160 = vmatprep.subr.bf16.mxu0 0
    %161 = vmatpush1.bf16.xpose.msra.mxu0 0
    %162 = vmatprep.subr.bf16.mxu0 0
    %163 = vmatpush1.bf16.xpose.msra.mxu0 0
    %164 = vmatprep.subr.bf16.mxu0 0
    %165 = vmatpush1.bf16.xpose.msra.mxu0 0
    %166 = vmatprep.subr.bf16.mxu0 0
    %167 = vmatpush1.bf16.xpose.msra.mxu0 0
    %168 = vmatprep.mubr.bf16.mxu0 0
    %169 = vmatmul.mubr.bf16.gmra.mrb[0].mxu0 %v128
    %v170 = vpop.f32.mrb[0].mxu0
    %v171 = vadd.f32 %v102, %v170
    %v172 = vpop.f32.mrb[0].mxu0
    %v173 = vpop.f32.mrb[0].mxu0
    %v174 = vadd.f32 %v105, %v173
    %v175 = vpop.f32.mrb[0].mxu0
    %176 = vmatprep.mubr.bf16.mxu0 0
    %177 = vmatmul.mubr.bf16.gmra.mrb[0].mxu0 %v131
    %v178 = vpop.f32.mrb[0].mxu0
    %v179 = vadd.f32 %v110, %v178
    %v180 = vpop.f32.mrb[0].mxu0
    %v181 = vpop.f32.mrb[0].mxu0
    %v182 = vadd.f32 %v113, %v181
    %v183 = vpop.f32.mrb[0].mxu0
    %184 = vdwg.mxu0
    %v185 = vld [vmem:[%s4] sm:$0xff]
    %v186 = vld [vmem:[%s4 + $0x8] sm:$0xff]
    %v187 = vld [vmem:[%s4 + $0x10] sm:$0xff]
    %v188 = vld [vmem:[%s4 + $0x18] sm:$0xff]
    %190 = vset.pattern.permute.xlu0 0
    %191 = vperm.xlu0 %190, %v185
    %v192 = vpop.permute.xlu0 %191
    %195 = vset.pattern.permute.xlu0 0
    %196 = vperm.xlu0 %195, %v186
    %v197 = vpop.permute.xlu0 %196
    %200 = vset.pattern.permute.xlu0 0
    %201 = vperm.xlu0 %200, %v187
    %v202 = vpop.permute.xlu0 %201
    %205 = vset.pattern.permute.xlu0 0
    %206 = vperm.xlu0 %205, %v188
    %v207 = vpop.permute.xlu0 %206
    %v209 = vadd.f32 %v171, %v192
    %v210 = vadd.f32 %v174, %v197
    %v211 = vadd.f32 %v179, %v202
    %v212 = vadd.f32 %v182, %v207
    %vm213 = vcmp.gt.f32.partialorder %v209, 0.0
    %vm214 = vcmp.gt.f32.partialorder %v210, 0.0
    %vm215 = vcmp.gt.f32.partialorder %v211, 0.0
    %vm216 = vcmp.gt.f32.partialorder %v212, 0.0
    %v217 = vmul.f32 %v209, 0.01
    %v218 = vmul.f32 %v210, 0.01
    %v219 = vmul.f32 %v211, 0.01
    %v220 = vmul.f32 %v212, 0.01
    %v221 = vsel %vm213, %v209, %v217
    %v222 = vsel %vm214, %v210, %v218
    %v223 = vsel %vm215, %v211, %v219
    %v224 = vsel %vm216, %v212, %v220
    %v225 = vld [vmem:[%s5] sm:$0xf]
    %v226 = vld [vmem:[%s5 + $0x4] sm:$0xf]
    %v227 = vld [vmem:[%s5 + $0x8] sm:$0xf]
    %v228 = vld [vmem:[%s5 + $0xc] sm:$0xf]
    %v229 = vpack.c.bf16 %v222, %v221
    %v230 = vpack.c.bf16 %v224, %v223
    %v231 = vld [vmem:[%s6] sm:$0xff]
    %v232 = vld [vmem:[%s6 + $0x8] sm:$0xff]
    %v233 = vld [vmem:[%s6 + $0x10] sm:$0xff]
    %v234 = vld [vmem:[%s6 + $0x18] sm:$0xff]
    %236 = vset.pattern.permute.xlu0 0
    %237 = vperm.xlu0 %236, %v231
    %v238 = vpop.permute.xlu0 %237
    %241 = vset.pattern.permute.xlu0 0
    %242 = vperm.xlu0 %241, %v232
    %v243 = vpop.permute.xlu0 %242
    %246 = vset.pattern.permute.xlu0 0
    %247 = vperm.xlu0 %246, %v233
    %v248 = vpop.permute.xlu0 %247
    %251 = vset.pattern.permute.xlu0 0
    %252 = vperm.xlu0 %251, %v234
    %v253 = vpop.permute.xlu0 %252
    %v259 = vunpack.c.l.b16 %v225
    %v260 = vunpack.c.l.b16 %v226
    %v261 = vunpack.c.l.b16 %v227
    %v262 = vunpack.c.l.b16 %v228
    %v263 = vpack.c.b16 %v260, %v259
    %v264 = vpack.c.b16 %v262, %v261
    %vm265 = vcmask 261120
    %v267 = vsel %vm265, %v263, 0
    %v270 = vsel %vm265, %v264, 0
    %272 = vmatprep.subr.bf16.mxu0 0
    %273 = vmatpush1.bf16.msra.mxu0 %v229
    %274 = vmatprep.subr.bf16.mxu0 0
    %275 = vmatpush1.bf16.msra.mxu0 %v230
    %276 = vmatprep.subr.bf16.mxu0 0
    %277 = vmatpush1.bf16.msra.mxu0 0
    %278 = vmatprep.subr.bf16.mxu0 0
    %279 = vmatpush1.bf16.msra.mxu0 0
    %280 = vmatprep.subr.bf16.mxu0 0
    %281 = vmatpush1.bf16.msra.mxu0 0
    %282 = vmatprep.subr.bf16.mxu0 0
    %283 = vmatpush1.bf16.msra.mxu0 0
    %284 = vmatprep.subr.bf16.mxu0 0
    %285 = vmatpush1.bf16.msra.mxu0 0
    %286 = vmatprep.subr.bf16.mxu0 0
    %287 = vmatpush1.bf16.msra.mxu0 0
    %288 = vmatprep.subr.bf16.mxu0 0
    %289 = vmatpush1.bf16.msra.mxu0 0
    %290 = vmatprep.subr.bf16.mxu0 0
    %291 = vmatpush1.bf16.msra.mxu0 0
    %292 = vmatprep.subr.bf16.mxu0 0
    %293 = vmatpush1.bf16.msra.mxu0 0
    %294 = vmatprep.subr.bf16.mxu0 0
    %295 = vmatpush1.bf16.msra.mxu0 0
    %296 = vmatprep.subr.bf16.mxu0 0
    %297 = vmatpush1.bf16.msra.mxu0 0
    %298 = vmatprep.subr.bf16.mxu0 0
    %299 = vmatpush1.bf16.msra.mxu0 0
    %300 = vmatprep.subr.bf16.mxu0 0
    %301 = vmatpush1.bf16.msra.mxu0 0
    %302 = vmatprep.subr.bf16.mxu0 0
    %303 = vmatpush1.bf16.msra.mxu0 0
    %304 = vmatprep.mubr.bf16.mxu0 0
    %305 = vmatmul.mubr.bf16.gmra.mrb[0].mxu0 %v267
    %v306 = vpop.f32.mrb[0].mxu0
    %v307 = vadd.f32 %v238, %v306
    %v308 = vpop.f32.mrb[0].mxu0
    %v309 = vpop.f32.mrb[0].mxu0
    %v310 = vadd.f32 %v243, %v309
    %v311 = vpop.f32.mrb[0].mxu0
    %312 = vmatprep.mubr.bf16.mxu0 0
    %313 = vmatmul.mubr.bf16.gmra.mrb[0].mxu0 %v270
    %v314 = vpop.f32.mrb[0].mxu0
    %v315 = vadd.f32 %v248, %v314
    %v316 = vpop.f32.mrb[0].mxu0
    %v317 = vpop.f32.mrb[0].mxu0
    %v318 = vadd.f32 %v253, %v317
    %v319 = vpop.f32.mrb[0].mxu0
    %320 = vdwg.mxu0
    %vm321 = vcmp.gt.f32.partialorder %v307, 0.0
    %vm322 = vcmp.gt.f32.partialorder %v310, 0.0
    %vm323 = vcmp.gt.f32.partialorder %v315, 0.0
    %vm324 = vcmp.gt.f32.partialorder %v318, 0.0
    %v325 = vmul.f32 %v307, 0.01
    %v326 = vmul.f32 %v310, 0.01
    %v327 = vmul.f32 %v315, 0.01
    %v328 = vmul.f32 %v318, 0.01
    %v329 = vsel %vm321, %v307, %v325
    %v330 = vsel %vm322, %v310, %v326
    %v331 = vsel %vm323, %v315, %v327
    %v332 = vsel %vm324, %v318, %v328
    %v333 = vld [vmem:[%s7] sm:$0xff]
    %v334 = vld [vmem:[%s7 + $0x8] sm:$0xff]
    %v335 = vld [vmem:[%s7 + $0x10] sm:$0xff]
    %v336 = vld [vmem:[%s7 + $0x18] sm:$0xff]
    %338 = vset.pattern.permute.xlu0 0
    %339 = vperm.xlu0 %338, %v333
    %v340 = vpop.permute.xlu0 %339
    %343 = vset.pattern.permute.xlu0 0
    %344 = vperm.xlu0 %343, %v334
    %v345 = vpop.permute.xlu0 %344
    %348 = vset.pattern.permute.xlu0 0
    %349 = vperm.xlu0 %348, %v335
    %v350 = vpop.permute.xlu0 %349
    %353 = vset.pattern.permute.xlu0 0
    %354 = vperm.xlu0 %353, %v336
    %v355 = vpop.permute.xlu0 %354
    %v357 = vmul.f32 %v329, %v340
    %v358 = vmul.f32 %v330, %v345
    %v359 = vmul.f32 %v331, %v350
    %v360 = vmul.f32 %v332, %v355
    %vm361 = vcmask 64512
    %v362 = vsel %vm361, %v357, 0.0
    %v363 = vsel %vm361, %v358, 0.0
    %v364 = vadd.f32 %v362, %v363
    %v365 = vsel %vm361, %v359, 0.0
    %v366 = vadd.f32 %v364, %v365
    %v367 = vsel %vm361, %v360, 0.0
    %v368 = vadd.f32 %v366, %v367
    %v369 = vrot.slane %v368, 4
    %v370 = vadd.f32 %v368, %v369
    %v371 = vrot.slane %v370, 2
    %v372 = vadd.f32 %v370, %v371
    %v373 = vrot.slane %v372, 1
    %v374 = vadd.f32 %v372, %v373
    %s375 = sld [smem:[#allocation2]]
    %v376 = vstv %s375
    %v377 = vadd.f32 %v374, %v376
    %vm378 = vcmask 57344
    %379 = vst.msk [vmem:[#allocation3] sm:$0x1] %vm378, %v377
    // Predicated region
    $region38: #{tpu_custom_call.1} parent=1 // pred_check
      _
    $region39: #{tpu_custom_call.1} parent=1 // pred_check_branch
      %381 = sbr.rel (0) target = $region41
    $region40: #{tpu_custom_call.1} parent=1 // pred_region
      %s383 = ssub.s32 16, 16
      %384 = vsyncadd [#allocation4], %s383
      %s386 = sshll.u32 [#allocation3], 4
      %s387 = int_to_ptr.vmem [resolvable:$true] %s386
      %389 = dma.vmem_to_hbm [thread:$0]  %s387, 16, %s9, [#allocation4]
    $region41: #{tpu_custom_call.1} parent=1 // pred_fallthru
      _
    // Predicated region
    $region42: #{tpu_custom_call.1} parent=1 // pred_check
      _
    $region43: #{tpu_custom_call.1} parent=1 // pred_check_branch
      %391 = sbr.rel (0) target = $region45
    $region44: #{tpu_custom_call.1} parent=1 // pred_region
      %392 = dma.done [#allocation4], 16
    $region45: #{tpu_custom_call.1} parent=1 // pred_fallthru
      _
    %393 = vsyncpa [#allocation4], 1

</llo_original>
